<compile_context>
chip_gen: v7x
topology: tpu7x:2x2x1
jax: 0.10.0
libtpu: 0.0.40
codegen_flags: <defaults>
</compile_context>

<pallas_src>
import jax
import jax.numpy as jnp
from jax import lax
from jax.experimental import pallas as pl
from jax.experimental.pallas import tpu as pltpu


EPS = 1e-6                      # GroupNorm eps used by VQGAN's `normalize`
VMEM_LIMIT = 48 * 1024 * 1024   # raise scoped VMEM (default 16/32 MiB), < v7x 64 MiB


# --------------------------------------------------------------------------
# Pass 1: GroupNorm + fused QKV projection
# --------------------------------------------------------------------------
def norm_qkv_kernel(x_ref, gavg_ref, gamma_ref, beta_ref, wqkv_ref, bqkv_ref,
                    q_ref, k_ref, v_ref):
    x = x_ref[0]                                  # (N, C) f32
    N, C = x.shape
    inv_n = 1.0 / N

    # Per-channel token means, then one fused group-average matmul
    # (gavg[i, j] = 1/(C//G) if channel i, j share a group).
    mu_c = jnp.sum(x, axis=0, keepdims=True) * inv_n          # (1, C)
    ms_c = jnp.sum(x * x, axis=0, keepdims=True) * inv_n      # (1, C)
    mean_c = jnp.dot(mu_c, gavg_ref[...], preferred_element_type=jnp.float32)
    ex2_c = jnp.dot(ms_c, gavg_ref[...], preferred_element_type=jnp.float32)
    var_c = jnp.maximum(ex2_c - mean_c * mean_c, 0.0)         # clamp cancellation
    inv_std = lax.rsqrt(var_c + EPS)

    # Fold GroupNorm affine into one scale/shift pair: xn = x*a + b (2 VPU ops)
    a = gamma_ref[...] * inv_std                              # (1, C)
    b = beta_ref[...] - mean_c * a                            # (1, C)
    xn = (x * a + b).astype(jnp.bfloat16)                     # (N, C) bf16

    # Fused QKV projection: one (N,C) x (C,3C) bf16 matmul, f32 accumulation.
    qkv = jnp.dot(xn, wqkv_ref[...], preferred_element_type=jnp.float32)
    qkv = qkv + bqkv_ref[...]                                 # (N, 3C) f32

    q_ref[0] = qkv[:, :C].astype(jnp.bfloat16)
    k_ref[0] = qkv[:, C:2 * C].astype(jnp.bfloat16)
    v_ref[0] = qkv[:, 2 * C:].astype(jnp.bfloat16)


# --------------------------------------------------------------------------
# Pass 2: flash-style attention + proj_out + residual
# --------------------------------------------------------------------------
def flash_attn_kernel(xres_ref, q_ref, k_ref, v_ref, wp_ref, bp_ref, o_ref,
                      m_sc, l_sc, acc_sc):
    ki = pl.program_id(2)

    @pl.when(ki == 0)
    def _():
        m_sc[...] = jnp.full_like(m_sc, -jnp.inf)
        l_sc[...] = jnp.zeros_like(l_sc)
        acc_sc[...] = jnp.zeros_like(acc_sc)

    q = q_ref[0]                                  # (TQ, C) bf16 (scale pre-folded)
    k = k_ref[0]                                  # (TK, C) bf16
    v = v_ref[0]                                  # (TK, C) bf16

    # Contract last dims directly — no explicit k.T materialization.
    s = lax.dot_general(q, k, dimension_numbers=(((1,), (1,)), ((), ())),
                        preferred_element_type=jnp.float32)   # (TQ, TK) f32

    m_prev = m_sc[...]
    m_new = jnp.maximum(m_prev, jnp.max(s, axis=-1, keepdims=True))
    alpha = jnp.exp(m_prev - m_new)
    p = jnp.exp(s - m_new)                                    # (TQ, TK) f32
    l_sc[...] = alpha * l_sc[...] + jnp.sum(p, axis=-1, keepdims=True)
    acc_sc[...] = alpha * acc_sc[...] + jnp.dot(
        p.astype(jnp.bfloat16), v, preferred_element_type=jnp.float32)
    m_sc[...] = m_new

    @pl.when(ki == pl.num_programs(2) - 1)
    def _():
        out = acc_sc[...] * pl.reciprocal(l_sc[...], approx=True)   # (TQ, C) f32
        out = jnp.dot(out.astype(jnp.bfloat16), wp_ref[...],
                      preferred_element_type=jnp.float32) + bp_ref[...]
        o_ref[0] = xres_ref[0] + out                                # residual in f32


def _pick_tile(n, target):
    """Largest divisor of n that is <= target and a multiple of 8 (or n itself)."""
    if n <= target:
        return n
    for t in range(min(target, n), 0, -1):
        if n % t == 0 and (t % 8 == 0 or t == n):
            return t
    return n


def attn_block(x, params, tq_target=256, tk_target=512):
    """x: (B, C, H, W, D) float32. Returns same shape."""
    B, C, H, W, D = x.shape
    N = H * W * D

    gamma, beta, gavg, wqkv, bqkv, wp, bp = params

    # rearrange 'b c h w d -> b (h w d) c'
    x_nc = jnp.transpose(x, (0, 2, 3, 4, 1)).reshape(B, N, C)

    # ---------------- pass 1: GroupNorm + fused QKV ----------------
    q, k, v = pl.pallas_call(
        norm_qkv_kernel,
        out_shape=tuple(jax.ShapeDtypeStruct((B, N, C), jnp.bfloat16)
                        for _ in range(3)),
        grid_spec=pltpu.PrefetchScalarGridSpec(
            num_scalar_prefetch=0,
            grid=(B,),
            in_specs=[
                pl.BlockSpec((1, N, C), lambda b: (b, 0, 0)),     # x
                pl.BlockSpec((C, C), lambda b: (0, 0)),           # group-average mat
                pl.BlockSpec((1, C), lambda b: (0, 0)),           # gamma
                pl.BlockSpec((1, C), lambda b: (0, 0)),           # beta
                pl.BlockSpec((C, 3 * C), lambda b: (0, 0)),       # W_qkv (bf16)
                pl.BlockSpec((1, 3 * C), lambda b: (0, 0)),       # b_qkv (f32)
            ],
            out_specs=[pl.BlockSpec((1, N, C), lambda b: (b, 0, 0))] * 3,
        ),
        compiler_params=pltpu.CompilerParams(
            dimension_semantics=("parallel",),
            vmem_limit_bytes=VMEM_LIMIT),
    )(x_nc, gavg, gamma, beta, wqkv, bqkv)

    # ---------------- pass 2: flash attention + proj + residual ----------------
    tq = _pick_tile(N, tq_target)
    tk = _pick_tile(N, tk_target)
    nq, nk = N // tq, N // tk

    out_nc = pl.pallas_call(
        flash_attn_kernel,
        out_shape=jax.ShapeDtypeStruct((B, N, C), jnp.float32),
        grid_spec=pltpu.PrefetchScalarGridSpec(
            num_scalar_prefetch=0,
            grid=(B, nq, nk),
            in_specs=[
                pl.BlockSpec((1, tq, C), lambda b, qi, ki: (b, qi, 0)),  # residual x
                pl.BlockSpec((1, tq, C), lambda b, qi, ki: (b, qi, 0)),  # q
                pl.BlockSpec((1, tk, C), lambda b, qi, ki: (b, ki, 0)),  # k
                pl.BlockSpec((1, tk, C), lambda b, qi, ki: (b, ki, 0)),  # v
                pl.BlockSpec((C, C), lambda b, qi, ki: (0, 0)),          # W_proj (bf16)
                pl.BlockSpec((1, C), lambda b, qi, ki: (0, 0)),          # b_proj (f32)
            ],
            out_specs=pl.BlockSpec((1, tq, C), lambda b, qi, ki: (b, qi, 0)),
            scratch_shapes=[
                pltpu.VMEM((tq, 1), jnp.float32),   # running max
                pltpu.VMEM((tq, 1), jnp.float32),   # running denom
                pltpu.VMEM((tq, C), jnp.float32),   # running PV accumulator
            ],
        ),
        compiler_params=pltpu.CompilerParams(
            dimension_semantics=("parallel", "parallel", "arbitrary"),
            vmem_limit_bytes=VMEM_LIMIT),
    )(x_nc, q, k, v, wp, bp)

    # rearrange 'b (h w d) c -> b c h w d'
    return jnp.transpose(out_nc.reshape(B, H, W, D, C), (0, 4, 1, 2, 3))


# --------------------------------------------------------------------------
# Parameter construction + plain-JAX reference
# --------------------------------------------------------------------------
def make_params(key, C, G):
    """Deterministic synthetic parameters (shapes from AttnBlock.__init__)."""
    ks = jax.random.split(key, 10)
    scale = 1.0 / jnp.sqrt(jnp.float32(C))
    gamma = (1.0 + 0.1 * jax.random.normal(ks[0], (1, C))).astype(jnp.float32)
    beta = (0.1 * jax.random.normal(ks[1], (1, C))).astype(jnp.float32)
    # fused group-average matrix: gavg[i, j] = 1/(C//G) if same group
    grp = jnp.arange(C) // (C // G)
    gavg = ((grp[:, None] == grp[None, :]).astype(jnp.float32) / (C // G))
    # qkv Linear(C, 3C), stored transposed (C, 3C); attention scale C**-0.5
    # folded into the q third of the weights/bias (host-side).
    wq = scale * jax.random.normal(ks[2], (C, C))
    wk = scale * jax.random.normal(ks[3], (C, C))
    wv = scale * jax.random.normal(ks[4], (C, C))
    bq = scale * jax.random.normal(ks[5], (1, C))
    bk = scale * jax.random.normal(ks[6], (1, C))
    bv = scale * jax.random.normal(ks[7], (1, C))
    attn_scale = float(C) ** (-0.5)
    wqkv = jnp.concatenate([wq * attn_scale, wk, wv], axis=1).astype(jnp.bfloat16)
    bqkv = jnp.concatenate([bq * attn_scale, bk, bv], axis=1).astype(jnp.float32)
    # proj_out Linear(C, C)
    wp = (scale * jax.random.normal(ks[8], (C, C))).astype(jnp.bfloat16)
    bp = (scale * jax.random.normal(ks[9], (1, C))).astype(jnp.float32)
    return (gamma, beta, gavg, wqkv, bqkv, wp, bp)


def attn_block_reference(x, params, G):
    """Plain-JAX reference mirroring the PyTorch forward (bf16 MXU inputs,
    f32 accumulation, to match the kernel's precision choices)."""
    gamma, beta, _gavg, wqkv, bqkv, wp, bp = params
    B, C, H, W, D = x.shape
    N = H * W * D
    # GroupNorm (two-pass formulation)
    xg = x.reshape(B, G, C // G, N)
    mean = jnp.mean(xg, axis=(2, 3), keepdims=True)
    var = jnp.mean((xg - mean) ** 2, axis=(2, 3), keepdims=True)
    xn = ((xg - mean) / jnp.sqrt(var + EPS)).reshape(B, C, H, W, D)
    xn = xn * gamma.reshape(1, C, 1, 1, 1) + beta.reshape(1, C, 1, 1, 1)
    # b c h w d -> b (hwd) c
    h = jnp.transpose(xn, (0, 2, 3, 4, 1)).reshape(B, N, C).astype(jnp.bfloat16)
    qkv = jnp.einsum('bnc,cd->bnd', h, wqkv,
                     preferred_element_type=jnp.float32) + bqkv
    q, k, v = qkv[..., :C], qkv[..., C:2 * C], qkv[..., 2 * C:]
    q = q.astype(jnp.bfloat16)
    k = k.astype(jnp.bfloat16)
    v = v.astype(jnp.bfloat16)
    s = jnp.einsum('bnc,bmc->bnm', q, k, preferred_element_type=jnp.float32)
    p = jax.nn.softmax(s, axis=-1)     # C**-0.5 already folded into q weights
    out = jnp.einsum('bnm,bmc->bnc', p.astype(jnp.bfloat16), v,
                     preferred_element_type=jnp.float32)
    out = jnp.einsum('bnc,cd->bnd', out.astype(jnp.bfloat16), wp,
                     preferred_element_type=jnp.float32) + bp
    out = jnp.transpose(out.reshape(B, H, W, D, C), (0, 4, 1, 2, 3))
    return x + out


if __name__ == "__main__":
    B, C, H, W, D = 2, 64, 4, 4, 4      # small test shapes; N = H*W*D = 64
    G = 32                              # normalize() = GroupNorm(32, C, eps=1e-6)

    key = jax.random.PRNGKey(0)
    kx, kp = jax.random.split(key)
    x = jax.random.normal(kx, (B, C, H, W, D), dtype=jnp.float32)
    params = make_params(kp, C, G)

    y = attn_block(x, params)
    jax.block_until_ready(y)

    y_ref = attn_block_reference(x, params, G)
    assert y.shape == x.shape
    # bf16 MXU inputs (f32 accumulation) on both sides -> modest tolerance.
    assert jnp.allclose(y, y_ref, atol=1e-2, rtol=1e-2), "mismatch vs JAX reference"

    print("KERNEL_OK")
</pallas_src>

<mosaic_0001>
module attributes {stable_mosaic.version = 11 : i64} {
  func.func @norm_qkv_kernel(%arg0: i32, %arg1: memref<1x64x64xf32, #tpu.memory_space<vmem>>, %arg2: memref<64x64xf32, #tpu.memory_space<vmem>>, %arg3: memref<1x64xf32, #tpu.memory_space<vmem>>, %arg4: memref<1x64xf32, #tpu.memory_space<vmem>>, %arg5: memref<64x192xbf16, #tpu.memory_space<vmem>>, %arg6: memref<1x192xf32, #tpu.memory_space<vmem>>, %arg7: memref<1x64x64xbf16, #tpu.memory_space<vmem>>, %arg8: memref<1x64x64xbf16, #tpu.memory_space<vmem>>, %arg9: memref<1x64x64xbf16, #tpu.memory_space<vmem>>) attributes {dimension_semantics = [#tpu.dimension_semantics<parallel>], iteration_bounds = array<i64: 2>, scalar_prefetch = 0 : i64, scratch_operands = 0 : i64, tpu.core_type = #tpu.core_type<tc>, window_params = [{transform_indices = @transform_0, window_bounds = array<i64: 1, 64, 64>}, {pipeline_mode = #tpu.pipeline_mode<synchronous>, transform_indices = @transform_1, window_bounds = array<i64: 64, 64>}, {pipeline_mode = #tpu.pipeline_mode<synchronous>, transform_indices = @transform_2, window_bounds = array<i64: 1, 64>}, {pipeline_mode = #tpu.pipeline_mode<synchronous>, transform_indices = @transform_3, window_bounds = array<i64: 1, 64>}, {pipeline_mode = #tpu.pipeline_mode<synchronous>, transform_indices = @transform_4, window_bounds = array<i64: 64, 192>}, {pipeline_mode = #tpu.pipeline_mode<synchronous>, transform_indices = @transform_5, window_bounds = array<i64: 1, 192>}, {transform_indices = @transform_6, window_bounds = array<i64: 1, 64, 64>}, {transform_indices = @transform_7, window_bounds = array<i64: 1, 64, 64>}, {transform_indices = @transform_8, window_bounds = array<i64: 1, 64, 64>}]} {
    %c0 = arith.constant 0 : index
    %c0_0 = arith.constant 0 : index
    %c0_1 = arith.constant 0 : index
    %0 = vector.load %arg1[%c0, %c0_0, %c0_1] : memref<1x64x64xf32, #tpu.memory_space<vmem>>, vector<1x64x64xf32>
    %1 = vector.shape_cast %0 : vector<1x64x64xf32> to vector<64x64xf32>
    %cst = arith.constant dense<0.000000e+00> : vector<64xf32>
    %2 = vector.multi_reduction <add>, %1, %cst [0] : vector<64x64xf32> to vector<64xf32>
    %3 = vector.shape_cast %2 : vector<64xf32> to vector<1x64xf32>
    %cst_2 = arith.constant 1.562500e-02 : f32
    %4 = vector.broadcast %cst_2 : f32 to vector<1x64xf32>
    %5 = arith.mulf %3, %4 : vector<1x64xf32>
    %6 = arith.mulf %1, %1 : vector<64x64xf32>
    %cst_3 = arith.constant dense<0.000000e+00> : vector<64xf32>
    %7 = vector.multi_reduction <add>, %6, %cst_3 [0] : vector<64x64xf32> to vector<64xf32>
    %8 = vector.shape_cast %7 : vector<64xf32> to vector<1x64xf32>
    %cst_4 = arith.constant 1.562500e-02 : f32
    %9 = vector.broadcast %cst_4 : f32 to vector<1x64xf32>
    %10 = arith.mulf %8, %9 : vector<1x64xf32>
    %c0_5 = arith.constant 0 : index
    %c0_6 = arith.constant 0 : index
    %11 = vector.load %arg2[%c0_5, %c0_6] : memref<64x64xf32, #tpu.memory_space<vmem>>, vector<64x64xf32>
    %cst_7 = arith.constant dense<0.000000e+00> : vector<1x64xf32>
    %12 = tpu.matmul %5, %11, %cst_7 {dimension_numbers = #tpu.dot_dimension_numbers<[1], [0], [0], [1], [0, 0, 1, 1], [], []>} : vector<1x64xf32>, vector<64x64xf32>, vector<1x64xf32> -> vector<1x64xf32>
    %c0_8 = arith.constant 0 : index
    %c0_9 = arith.constant 0 : index
    %13 = vector.load %arg2[%c0_8, %c0_9] : memref<64x64xf32, #tpu.memory_space<vmem>>, vector<64x64xf32>
    %cst_10 = arith.constant dense<0.000000e+00> : vector<1x64xf32>
    %14 = tpu.matmul %10, %13, %cst_10 {dimension_numbers = #tpu.dot_dimension_numbers<[1], [0], [0], [1], [0, 0, 1, 1], [], []>} : vector<1x64xf32>, vector<64x64xf32>, vector<1x64xf32> -> vector<1x64xf32>
    %15 = arith.mulf %12, %12 : vector<1x64xf32>
    %16 = arith.subf %14, %15 : vector<1x64xf32>
    %cst_11 = arith.constant 0.000000e+00 : f32
    %17 = vector.broadcast %cst_11 : f32 to vector<1x64xf32>
    %18 = arith.maximumf %16, %17 : vector<1x64xf32>
    %cst_12 = arith.constant 9.99999997E-7 : f32
    %19 = vector.broadcast %cst_12 : f32 to vector<1x64xf32>
    %20 = arith.addf %18, %19 : vector<1x64xf32>
    %21 = math.rsqrt %20 : vector<1x64xf32>
    %c0_13 = arith.constant 0 : index
    %c0_14 = arith.constant 0 : index
    %22 = vector.load %arg3[%c0_13, %c0_14] : memref<1x64xf32, #tpu.memory_space<vmem>>, vector<1x64xf32>
    %23 = arith.mulf %22, %21 : vector<1x64xf32>
    %c0_15 = arith.constant 0 : index
    %c0_16 = arith.constant 0 : index
    %24 = vector.load %arg4[%c0_15, %c0_16] : memref<1x64xf32, #tpu.memory_space<vmem>>, vector<1x64xf32>
    %25 = arith.mulf %12, %23 : vector<1x64xf32>
    %26 = arith.subf %24, %25 : vector<1x64xf32>
    %27 = vector.broadcast %23 : vector<1x64xf32> to vector<64x64xf32>
    %28 = arith.mulf %1, %27 : vector<64x64xf32>
    %29 = vector.broadcast %26 : vector<1x64xf32> to vector<64x64xf32>
    %30 = arith.addf %28, %29 : vector<64x64xf32>
    %31 = arith.truncf %30 : vector<64x64xf32> to vector<64x64xbf16>
    %c0_17 = arith.constant 0 : index
    %c0_18 = arith.constant 0 : index
    %32 = vector.load %arg5[%c0_17, %c0_18] : memref<64x192xbf16, #tpu.memory_space<vmem>>, vector<64x192xbf16>
    %cst_19 = arith.constant dense<0.000000e+00> : vector<64x192xf32>
    %33 = tpu.matmul %31, %32, %cst_19 {dimension_numbers = #tpu.dot_dimension_numbers<[1], [0], [0], [1], [0, 0, 1, 1], [], []>} : vector<64x64xbf16>, vector<64x192xbf16>, vector<64x192xf32> -> vector<64x192xf32>
    %c0_20 = arith.constant 0 : index
    %c0_21 = arith.constant 0 : index
    %34 = vector.load %arg6[%c0_20, %c0_21] : memref<1x192xf32, #tpu.memory_space<vmem>>, vector<1x192xf32>
    %35 = vector.broadcast %34 : vector<1x192xf32> to vector<64x192xf32>
    %36 = arith.addf %33, %35 : vector<64x192xf32>
    %37 = vector.extract_strided_slice %36 {offsets = [0, 0], sizes = [64, 64], strides = [1, 1]} : vector<64x192xf32> to vector<64x64xf32>
    %38 = arith.truncf %37 : vector<64x64xf32> to vector<64x64xbf16>
    %c0_22 = arith.constant 0 : index
    %c0_23 = arith.constant 0 : index
    %c0_24 = arith.constant 0 : index
    %39 = vector.load %arg7[%c0_22, %c0_23, %c0_24] : memref<1x64x64xbf16, #tpu.memory_space<vmem>>, vector<1x64x64xbf16>
    %40 = vector.shape_cast %39 : vector<1x64x64xbf16> to vector<64x64xbf16>
    %41 = vector.shape_cast %38 : vector<64x64xbf16> to vector<1x64x64xbf16>
    tpu.vector_store %arg7[%c0_22, %c0_23, %c0_24], %41 {strides = array<i32>} : memref<1x64x64xbf16, #tpu.memory_space<vmem>>, vector<1x64x64xbf16>,
    %42 = vector.extract_strided_slice %36 {offsets = [0, 64], sizes = [64, 64], strides = [1, 1]} : vector<64x192xf32> to vector<64x64xf32>
    %43 = arith.truncf %42 : vector<64x64xf32> to vector<64x64xbf16>
    %c0_25 = arith.constant 0 : index
    %c0_26 = arith.constant 0 : index
    %c0_27 = arith.constant 0 : index
    %44 = vector.load %arg8[%c0_25, %c0_26, %c0_27] : memref<1x64x64xbf16, #tpu.memory_space<vmem>>, vector<1x64x64xbf16>
    %45 = vector.shape_cast %44 : vector<1x64x64xbf16> to vector<64x64xbf16>
    %46 = vector.shape_cast %43 : vector<64x64xbf16> to vector<1x64x64xbf16>
    tpu.vector_store %arg8[%c0_25, %c0_26, %c0_27], %46 {strides = array<i32>} : memref<1x64x64xbf16, #tpu.memory_space<vmem>>, vector<1x64x64xbf16>,
    %47 = vector.extract_strided_slice %36 {offsets = [0, 128], sizes = [64, 64], strides = [1, 1]} : vector<64x192xf32> to vector<64x64xf32>
    %48 = arith.truncf %47 : vector<64x64xf32> to vector<64x64xbf16>
    %c0_28 = arith.constant 0 : index
    %c0_29 = arith.constant 0 : index
    %c0_30 = arith.constant 0 : index
    %49 = vector.load %arg9[%c0_28, %c0_29, %c0_30] : memref<1x64x64xbf16, #tpu.memory_space<vmem>>, vector<1x64x64xbf16>
    %50 = vector.shape_cast %49 : vector<1x64x64xbf16> to vector<64x64xbf16>
    %51 = vector.shape_cast %48 : vector<64x64xbf16> to vector<1x64x64xbf16>
    tpu.vector_store %arg9[%c0_28, %c0_29, %c0_30], %51 {strides = array<i32>} : memref<1x64x64xbf16, #tpu.memory_space<vmem>>, vector<1x64x64xbf16>,
    return
  }
  func.func @transform_0(%arg0: i32) -> (i32, i32, i32) {
    %c0_i32 = arith.constant 0 : i32
    %c0_i32_0 = arith.constant 0 : i32
    %c0_i32_1 = arith.constant 0 : i32
    return %arg0, %c0_i32, %c0_i32_0 : i32, i32, i32
  }
  func.func @transform_1(%arg0: i32) -> (i32, i32) {
    %c0_i32 = arith.constant 0 : i32
    %c0_i32_0 = arith.constant 0 : i32
    %c0_i32_1 = arith.constant 0 : i32
    return %c0_i32, %c0_i32_0 : i32, i32
  }
  func.func @transform_2(%arg0: i32) -> (i32, i32) {
    %c0_i32 = arith.constant 0 : i32
    %c0_i32_0 = arith.constant 0 : i32
    %c0_i32_1 = arith.constant 0 : i32
    return %c0_i32, %c0_i32_0 : i32, i32
  }
  func.func @transform_3(%arg0: i32) -> (i32, i32) {
    %c0_i32 = arith.constant 0 : i32
    %c0_i32_0 = arith.constant 0 : i32
    %c0_i32_1 = arith.constant 0 : i32
    return %c0_i32, %c0_i32_0 : i32, i32
  }
  func.func @transform_4(%arg0: i32) -> (i32, i32) {
    %c0_i32 = arith.constant 0 : i32
    %c0_i32_0 = arith.constant 0 : i32
    %c0_i32_1 = arith.constant 0 : i32
    return %c0_i32, %c0_i32_0 : i32, i32
  }
  func.func @transform_5(%arg0: i32) -> (i32, i32) {
    %c0_i32 = arith.constant 0 : i32
    %c0_i32_0 = arith.constant 0 : i32
    %c0_i32_1 = arith.constant 0 : i32
    return %c0_i32, %c0_i32_0 : i32, i32
  }
  func.func @transform_6(%arg0: i32) -> (i32, i32, i32) {
    %c0_i32 = arith.constant 0 : i32
    %c0_i32_0 = arith.constant 0 : i32
    %c0_i32_1 = arith.constant 0 : i32
    return %arg0, %c0_i32, %c0_i32_0 : i32, i32, i32
  }
  func.func @transform_7(%arg0: i32) -> (i32, i32, i32) {
    %c0_i32 = arith.constant 0 : i32
    %c0_i32_0 = arith.constant 0 : i32
    %c0_i32_1 = arith.constant 0 : i32
    return %arg0, %c0_i32, %c0_i32_0 : i32, i32, i32
  }
  func.func @transform_8(%arg0: i32) -> (i32, i32, i32) {
    %c0_i32 = arith.constant 0 : i32
    %c0_i32_0 = arith.constant 0 : i32
    %c0_i32_1 = arith.constant 0 : i32
    return %arg0, %c0_i32, %c0_i32_0 : i32, i32, i32
  }
}

</mosaic_0001>

<llo_original>
// kernel: tpu_custom_call.1
$region0: #{tpu_custom_call.1}
  #allocation0 [shape = 'u32[]', space=smem, size = 0x4, offset = 0x4, fixed_abs, tag = 'smem constant byte address 0x4 - core index']
  #allocation1 [shape = 'u32[144,128]{1,0:T(1,128)}', space=vmem, size = 0x12000, scoped, tag = 'internal scratch']
  %s0 = inlined_call_operand.hbm [shape: f32[2,64,64], index: 0, kind: input, shape index: {}]
  %s1 = inlined_call_operand.hbm [shape: f32[64,64], index: 1, kind: input, shape index: {}]
  %s2 = inlined_call_operand.vmem [shape: f32[1,64], index: 2, kind: input, shape index: {}]
  %s3 = inlined_call_operand.vmem [shape: f32[1,64], index: 3, kind: input, shape index: {}]
  %s4 = inlined_call_operand.hbm [shape: bf16[64,192], index: 4, kind: input, shape index: {}]
  %s5 = inlined_call_operand.vmem [shape: f32[1,192], index: 5, kind: input, shape index: {}]
  %s6 = inlined_call_operand.hbm [shape: bf16[2,64,64], index: 6, kind: output, shape index: {0}]
  %s7 = inlined_call_operand.hbm [shape: bf16[2,64,64], index: 7, kind: output, shape index: {1}]
  %s8 = inlined_call_operand.hbm [shape: bf16[2,64,64], index: 8, kind: output, shape index: {2}]
  %9 = xla_tuple %s6, %s7, %s8
  %s10 = sld [smem:[#allocation0]]
  $region85: #{tpu_custom_call.1} parent=0
    _
  %s12 = ssub.s32 1, %s10
  %s13 = scalar_select 0, %s12, %s10
  $region1: #{tpu_custom_call.1} parent=0
    #allocation2 [shape = 'u8[65536]{0}', space=vmem, size = 0x10000, scoped, tag = 'input window, operand 0']
    #allocation3 [shape = 's32[2]{0}', space=sflag, size = 0x8, scoped, tag = 'scoped memory for tpu_custom_call.1']
    #allocation4 [shape = 's32[2]{0}', space=sflag, size = 0x8, scoped, tag = 'scoped memory for tpu_custom_call.1']
    #allocation5 [shape = 'u8[32768]{0}', space=vmem, size = 0x8000, scoped, tag = 'input window, operand 1, single buffered']
    #allocation6 [shape = 's32[1]{0}', space=sflag, size = 0x4, scoped, tag = 'scoped memory for tpu_custom_call.1']
    #allocation7 [shape = 'u8[32768]{0}', space=vmem, size = 0x8000, scoped, tag = 'input window, operand 4, single buffered']
    #allocation8 [shape = 'u8[32768]{0}', space=vmem, size = 0x8000, scoped, tag = 'output window, operand 0']
    #allocation9 [shape = 'u8[32768]{0}', space=vmem, size = 0x8000, scoped, tag = 'output window, operand 1']
    #allocation10 [shape = 's32[2]{0}', space=sflag, size = 0x8, scoped, tag = 'scoped memory for tpu_custom_call.1']
    #allocation11 [shape = 'u8[32768]{0}', space=vmem, size = 0x8000, scoped, tag = 'output window, operand 2']
    %14 = vsyncpa [#allocation3], 0
    %s15 = scalar_lea.sflag [#allocation3], 1
    %16 = vsyncpa %s15, 0
    %17 = vsyncpa [#allocation6], 0
    %18 = vsyncpa [#allocation4], 0
    %s19 = scalar_lea.sflag [#allocation4], 1
    %20 = vsyncpa %s19, 0
    %21 = vsyncpa [#allocation10], 0
    %s22 = scalar_lea.sflag [#allocation10], 1
    %23 = vsyncpa %s22, 0
    loop: start=0, step=1, limit=4
    $region2: #{tpu_custom_call.1} parent=1 // loop_pre_header
      _
    $region3: #{tpu_custom_call.1} parent=1 // loop_header
      %s25 = sphi 0, %s29
      %p26 = scmp.ge.s32.totalorder %s25, 4
      %s35 = sphi 0, %s37
      %s38 = sphi 0, %s35
      %s39 = sphi 0, %s38
      %s55 = sphi 0, %s39
      %s59 = sphi 0, %s59
      %s61 = sphi 0, %s59
      %s62 = sphi 0, %s61
      %s76 = sphi 0, %s62
      %s80 = sphi 0, %s80
      %s82 = sphi 0, %s80
      %s83 = sphi 0, %s82
      %s97 = sphi 0, %s83
      %s101 = sphi 0, %s101
      %s103 = sphi 0, %s101
      %s104 = sphi 0, %s103
      %s118 = sphi 0, %s104
      %s122 = sphi 0, %s122
      %s124 = sphi 0, %s122
      %s125 = sphi 0, %s124
      %s139 = sphi 0, %s125
      %s143 = sphi 0, %s143
      %s145 = sphi 0, %s143
      %s146 = sphi 0, %s145
      %s160 = sphi 0, %s146
      %s166 = sphi 0, %s168
      %s169 = sphi 0, %s166
      %s170 = sphi 0, %s169
      %s186 = sphi 0, %s170
      %s192 = sphi 0, %s194
      %s195 = sphi 0, %s192
      %s196 = sphi 0, %s195
      %s212 = sphi 0, %s196
      %s218 = sphi 0, %s220
      %s221 = sphi 0, %s218
      %s222 = sphi 0, %s221
      %s238 = sphi 0, %s222
    $region4: #{tpu_custom_call.1} parent=1 // loop_header_branch
      %28 = sbr.rel (%p26) target = $region8
    $region5: #{tpu_custom_call.1} parent=1 // loop_body
      %s30 = ssub.s32 %s25, 1
      %s31 = ssub.s32 %s25, 2
      %s32 = sadd.s32 %s25, 1
      %s33 = ssub.s32 %s25, %s32
      %p34 = scmp.eq.s32.totalorder %s33, 0
      %s36 = sadd.s32 %s35, 1
      %s37 = scalar_select %p34, %s35, %s36
      %p40 = pneg %p34
      %p41 = scmp.eq.s32.totalorder %s25, 1
      %p42 = por %p40, %p41
      %p43 = scmp.ne.s32.totalorder %s35, %s38
      %p44 = scmp.eq.s32.totalorder %s25, 0
      %p45 = por %p43, %p44
      %p46 = scmp.ne.s32.totalorder %s35, %s38
      %p47 = scmp.eq.s32.totalorder %s30, 1
      %p48 = por %p46, %p47
      %p49 = scmp.ne.s32.totalorder %s38, %s39
      %p50 = scmp.eq.s32.totalorder %s30, 0
      %p51 = por %p49, %p50
      %p52 = scmp.ne.s32.totalorder %s38, %s39
      %p53 = scmp.eq.s32.totalorder %s31, 1
      %p54 = por %p52, %p53
      %p56 = scmp.ne.s32.totalorder %s39, %s55
      %p57 = scmp.eq.s32.totalorder %s31, 0
      %p58 = por %p56, %p57
      %s60 = sadd.s32 %s59, 1
      %p63 = scmp.eq.s32.totalorder %s25, 1
      %p64 = scmp.ne.s32.totalorder %s59, %s61
      %p65 = scmp.eq.s32.totalorder %s25, 0
      %p66 = por %p64, %p65
      %p67 = scmp.ne.s32.totalorder %s59, %s61
      %p68 = scmp.eq.s32.totalorder %s30, 1
      %p69 = por %p67, %p68
      %p70 = scmp.ne.s32.totalorder %s61, %s62
      %p71 = scmp.eq.s32.totalorder %s30, 0
      %p72 = por %p70, %p71
      %p73 = scmp.ne.s32.totalorder %s61, %s62
      %p74 = scmp.eq.s32.totalorder %s31, 1
      %p75 = por %p73, %p74
      %p77 = scmp.ne.s32.totalorder %s62, %s76
      %p78 = scmp.eq.s32.totalorder %s31, 0
      %p79 = por %p77, %p78
      %s81 = sadd.s32 %s80, 1
      %p84 = scmp.eq.s32.totalorder %s25, 1
      %p85 = scmp.ne.s32.totalorder %s80, %s82
      %p86 = scmp.eq.s32.totalorder %s25, 0
      %p87 = por %p85, %p86
      %p88 = scmp.ne.s32.totalorder %s80, %s82
      %p89 = scmp.eq.s32.totalorder %s30, 1
      %p90 = por %p88, %p89
      %p91 = scmp.ne.s32.totalorder %s82, %s83
      %p92 = scmp.eq.s32.totalorder %s30, 0
      %p93 = por %p91, %p92
      %p94 = scmp.ne.s32.totalorder %s82, %s83
      %p95 = scmp.eq.s32.totalorder %s31, 1
      %p96 = por %p94, %p95
      %p98 = scmp.ne.s32.totalorder %s83, %s97
      %p99 = scmp.eq.s32.totalorder %s31, 0
      %p100 = por %p98, %p99
      %s102 = sadd.s32 %s101, 1
      %p105 = scmp.eq.s32.totalorder %s25, 1
      %p106 = scmp.ne.s32.totalorder %s101, %s103
      %p107 = scmp.eq.s32.totalorder %s25, 0
      %p108 = por %p106, %p107
      %p109 = scmp.ne.s32.totalorder %s101, %s103
      %p110 = scmp.eq.s32.totalorder %s30, 1
      %p111 = por %p109, %p110
      %p112 = scmp.ne.s32.totalorder %s103, %s104
      %p113 = scmp.eq.s32.totalorder %s30, 0
      %p114 = por %p112, %p113
      %p115 = scmp.ne.s32.totalorder %s103, %s104
      %p116 = scmp.eq.s32.totalorder %s31, 1
      %p117 = por %p115, %p116
      %p119 = scmp.ne.s32.totalorder %s104, %s118
      %p120 = scmp.eq.s32.totalorder %s31, 0
      %p121 = por %p119, %p120
      %s123 = sadd.s32 %s122, 1
      %p126 = scmp.eq.s32.totalorder %s25, 1
      %p127 = scmp.ne.s32.totalorder %s122, %s124
      %p128 = scmp.eq.s32.totalorder %s25, 0
      %p129 = por %p127, %p128
      %p130 = scmp.ne.s32.totalorder %s122, %s124
      %p131 = scmp.eq.s32.totalorder %s30, 1
      %p132 = por %p130, %p131
      %p133 = scmp.ne.s32.totalorder %s124, %s125
      %p134 = scmp.eq.s32.totalorder %s30, 0
      %p135 = por %p133, %p134
      %p136 = scmp.ne.s32.totalorder %s124, %s125
      %p137 = scmp.eq.s32.totalorder %s31, 1
      %p138 = por %p136, %p137
      %p140 = scmp.ne.s32.totalorder %s125, %s139
      %p141 = scmp.eq.s32.totalorder %s31, 0
      %p142 = por %p140, %p141
      %s144 = sadd.s32 %s143, 1
      %p147 = scmp.eq.s32.totalorder %s25, 1
      %p148 = scmp.ne.s32.totalorder %s143, %s145
      %p149 = scmp.eq.s32.totalorder %s25, 0
      %p150 = por %p148, %p149
      %p151 = scmp.ne.s32.totalorder %s143, %s145
      %p152 = scmp.eq.s32.totalorder %s30, 1
      %p153 = por %p151, %p152
      %p154 = scmp.ne.s32.totalorder %s145, %s146
      %p155 = scmp.eq.s32.totalorder %s30, 0
      %p156 = por %p154, %p155
      %p157 = scmp.ne.s32.totalorder %s145, %s146
      %p158 = scmp.eq.s32.totalorder %s31, 1
      %p159 = por %p157, %p158
      %p161 = scmp.ne.s32.totalorder %s146, %s160
      %p162 = scmp.eq.s32.totalorder %s31, 0
      %p163 = por %p161, %p162
      %s164 = ssub.s32 %s25, %s32
      %p165 = scmp.eq.s32.totalorder %s164, 0
      %s167 = sadd.s32 %s166, 1
      %s168 = scalar_select %p165, %s166, %s167
      %p171 = pneg %p165
      %p172 = scmp.eq.s32.totalorder %s25, 1
      %p173 = por %p171, %p172
      %p174 = scmp.ne.s32.totalorder %s166, %s169
      %p175 = scmp.eq.s32.totalorder %s25, 0
      %p176 = por %p174, %p175
      %p177 = scmp.ne.s32.totalorder %s166, %s169
      %p178 = scmp.eq.s32.totalorder %s30, 1
      %p179 = por %p177, %p178
      %p180 = scmp.ne.s32.totalorder %s169, %s170
      %p181 = scmp.eq.s32.totalorder %s30, 0
      %p182 = por %p180, %p181
      %p183 = scmp.ne.s32.totalorder %s169, %s170
      %p184 = scmp.eq.s32.totalorder %s31, 1
      %p185 = por %p183, %p184
      %p187 = scmp.ne.s32.totalorder %s170, %s186
      %p188 = scmp.eq.s32.totalorder %s31, 0
      %p189 = por %p187, %p188
      %s190 = ssub.s32 %s25, %s32
      %p191 = scmp.eq.s32.totalorder %s190, 0
      %s193 = sadd.s32 %s192, 1
      %s194 = scalar_select %p191, %s192, %s193
      %p197 = pneg %p191
      %p198 = scmp.eq.s32.totalorder %s25, 1
      %p199 = por %p197, %p198
      %p200 = scmp.ne.s32.totalorder %s192, %s195
      %p201 = scmp.eq.s32.totalorder %s25, 0
      %p202 = por %p200, %p201
      %p203 = scmp.ne.s32.totalorder %s192, %s195
      %p204 = scmp.eq.s32.totalorder %s30, 1
      %p205 = por %p203, %p204
      %p206 = scmp.ne.s32.totalorder %s195, %s196
      %p207 = scmp.eq.s32.totalorder %s30, 0
      %p208 = por %p206, %p207
      %p209 = scmp.ne.s32.totalorder %s195, %s196
      %p210 = scmp.eq.s32.totalorder %s31, 1
      %p211 = por %p209, %p210
      %p213 = scmp.ne.s32.totalorder %s196, %s212
      %p214 = scmp.eq.s32.totalorder %s31, 0
      %p215 = por %p213, %p214
      %s216 = ssub.s32 %s25, %s32
      %p217 = scmp.eq.s32.totalorder %s216, 0
      %s219 = sadd.s32 %s218, 1
      %s220 = scalar_select %p217, %s218, %s219
      %p223 = pneg %p217
      %p224 = scmp.eq.s32.totalorder %s25, 1
      %p225 = por %p223, %p224
      %p226 = scmp.ne.s32.totalorder %s218, %s221
      %p227 = scmp.eq.s32.totalorder %s25, 0
      %p228 = por %p226, %p227
      %p229 = scmp.ne.s32.totalorder %s218, %s221
      %p230 = scmp.eq.s32.totalorder %s30, 1
      %p231 = por %p229, %p230
      %p232 = scmp.ne.s32.totalorder %s221, %s222
      %p233 = scmp.eq.s32.totalorder %s30, 0
      %p234 = por %p232, %p233
      %p235 = scmp.ne.s32.totalorder %s221, %s222
      %p236 = scmp.eq.s32.totalorder %s31, 1
      %p237 = por %p235, %p236
      %p239 = scmp.ne.s32.totalorder %s222, %s238
      %p240 = scmp.eq.s32.totalorder %s31, 0
      %p241 = por %p239, %p240
      %p242 = scmp.le.s32.totalorder 1, %s25
      %p243 = scmp.lt.s32.totalorder %s25, 3
      %p244 = pnand %p242, %p243
      %p245 = pneg %p244
      // Predicated region
      $region9: #{tpu_custom_call.1} parent=5 // pred_check
        _
      $region10: #{tpu_custom_call.1} parent=5 // pred_check_branch
        %247 = sbr.rel (%p244) target = $region12
      $region11: #{tpu_custom_call.1} parent=5 // pred_region
        %s248 = ssub.s32 %s25, 1
        // Predicated region
        $region13: #{tpu_custom_call.1} parent=11 // pred_check
          %p249 = pneg %p72
        $region14: #{tpu_custom_call.1} parent=11 // pred_check_branch
          %251 = sbr.rel (%p249) target = $region16
        $region15: #{tpu_custom_call.1} parent=11 // pred_region
          %s253 = ssub.s32 1024, 1024
          %254 = vsyncadd [#allocation6], %s253
          %s255 = sshll.u32 [#allocation5], 4
          %s256 = int_to_ptr.vmem [resolvable:$true] %s255
          %261 = dma.hbm_to_vmem [thread:$0]  %s1, 1024, %s256, [#allocation6], 128, 128, 8
        $region16: #{tpu_custom_call.1} parent=11 // pred_fallthru
          _
        // Predicated region
        $region17: #{tpu_custom_call.1} parent=11 // pred_check
          %p262 = pneg %p93
        $region18: #{tpu_custom_call.1} parent=11 // pred_check_branch
          %264 = sbr.rel (%p262) target = $region20
        $region19: #{tpu_custom_call.1} parent=11 // pred_region
          _
        $region20: #{tpu_custom_call.1} parent=11 // pred_fallthru
          _
        // Predicated region
        $region21: #{tpu_custom_call.1} parent=11 // pred_check
          %p265 = pneg %p114
        $region22: #{tpu_custom_call.1} parent=11 // pred_check_branch
          %267 = sbr.rel (%p265) target = $region24
        $region23: #{tpu_custom_call.1} parent=11 // pred_region
          _
        $region24: #{tpu_custom_call.1} parent=11 // pred_fallthru
          _
        // Predicated region
        $region25: #{tpu_custom_call.1} parent=11 // pred_check
          %p268 = pneg %p135
        $region26: #{tpu_custom_call.1} parent=11 // pred_check_branch
          %270 = sbr.rel (%p268) target = $region28
        $region27: #{tpu_custom_call.1} parent=11 // pred_region
          %s272 = ssub.s32 1024, 1024
          %273 = vsyncadd [#allocation6], %s272
          %s274 = sshll.u32 [#allocation7], 4
          %s275 = int_to_ptr.vmem [resolvable:$true] %s274
          %280 = dma.hbm_to_vmem [thread:$0]  %s4, 1024, %s275, [#allocation6], 128, 128, 8
        $region28: #{tpu_custom_call.1} parent=11 // pred_fallthru
          _
        // Predicated region
        $region29: #{tpu_custom_call.1} parent=11 // pred_check
          %p281 = pneg %p156
        $region30: #{tpu_custom_call.1} parent=11 // pred_check_branch
          %283 = sbr.rel (%p281) target = $region32
        $region31: #{tpu_custom_call.1} parent=11 // pred_region
          _
        $region32: #{tpu_custom_call.1} parent=11 // pred_fallthru
          _
      $region12: #{tpu_custom_call.1} parent=5 // pred_fallthru
        _
      %p284 = scmp.lt.s32.totalorder %s25, 2
      // Predicated region
      $region33: #{tpu_custom_call.1} parent=5 // pred_check
        %p285 = pneg %p284
      $region34: #{tpu_custom_call.1} parent=5 // pred_check_branch
        %287 = sbr.rel (%p285) target = $region36
      $region35: #{tpu_custom_call.1} parent=5 // pred_region
        // Predicated region
        $region37: #{tpu_custom_call.1} parent=35 // pred_check
          %p288 = pneg %p45
        $region38: #{tpu_custom_call.1} parent=35 // pred_check_branch
          %290 = sbr.rel (%p288) target = $region40
        $region39: #{tpu_custom_call.1} parent=35 // pred_region
          %s291 = sand.u32 %s35, 1
          %s292 = scalar_lea.sflag [#allocation3], %s291
          %s293 = sand.u32 %s35, 1
          %s294 = smul.addr %s293, 64
          %s295 = scalar_lea.vmem [#allocation2], %s294
          %s297 = ssub.s32 1024, 1024
          %298 = vsyncadd %s292, %s297
          %s299 = smul.addr %s25, 8
          %s300 = smul.addr %s299, 128
          %s301 = scalar_lea.hbm %s0, %s300
          %s302 = sshll.u32 %s295, 4
          %s303 = int_to_ptr.vmem [resolvable:$true] %s302
          %308 = dma.hbm_to_vmem [thread:$0]  %s301, 1024, %s303, %s292, 128, 128, 8
        $region40: #{tpu_custom_call.1} parent=35 // pred_fallthru
          _
      $region36: #{tpu_custom_call.1} parent=5 // pred_fallthru
        _
      %p309 = scmp.le.s32.totalorder 1, %s25
      %p310 = scmp.lt.s32.totalorder %s25, 3
      %p311 = pnand %p309, %p310
      %p312 = pneg %p311
      // Predicated region
      $region41: #{tpu_custom_call.1} parent=5 // pred_check
        _
      $region42: #{tpu_custom_call.1} parent=5 // pred_check_branch
        %314 = sbr.rel (%p311) target = $region44
      $region43: #{tpu_custom_call.1} parent=5 // pred_region
        %s315 = ssub.s32 %s25, 1
        %s316 = sand.u32 %s38, 1
        %s317 = scalar_lea.sflag [#allocation3], %s316
        %s318 = sand.u32 %s38, 1
        %s319 = smul.addr %s318, 64
        %s320 = scalar_lea.vmem [#allocation2], %s319
        // Predicated region
        $region45: #{tpu_custom_call.1} parent=43 // pred_check
          %p321 = pneg %p51
        $region46: #{tpu_custom_call.1} parent=43 // pred_check_branch
          %323 = sbr.rel (%p321) target = $region48
        $region47: #{tpu_custom_call.1} parent=43 // pred_region
          %324 = dma.done %s317, 1024
        $region48: #{tpu_custom_call.1} parent=43 // pred_fallthru
          _
        // Predicated region
        $region49: #{tpu_custom_call.1} parent=43 // pred_check
          %p325 = pneg %p72
        $region50: #{tpu_custom_call.1} parent=43 // pred_check_branch
          %327 = sbr.rel (%p325) target = $region52
        $region51: #{tpu_custom_call.1} parent=43 // pred_region
          %328 = dma.done [#allocation6], 1024
        $region52: #{tpu_custom_call.1} parent=43 // pred_fallthru
          _
        // Predicated region
        $region53: #{tpu_custom_call.1} parent=43 // pred_check
          %p329 = pneg %p135
        $region54: #{tpu_custom_call.1} parent=43 // pred_check_branch
          %331 = sbr.rel (%p329) target = $region56
        $region55: #{tpu_custom_call.1} parent=43 // pred_region
          %332 = dma.done [#allocation6], 1024
        $region56: #{tpu_custom_call.1} parent=43 // pred_fallthru
          _
        %s333 = sand.u32 %s38, 1
        %s334 = scalar_lea.sflag [#allocation3], %s333
        %s335 = sand.u32 %s38, 1
        %s336 = smul.addr %s335, 64
        %s337 = scalar_lea.vmem [#allocation2], %s336
        %p338 = pneg %p51
        %p339 = pneg %p48
        %p340 = pneg %p72
        %p341 = pneg %p69
        %p342 = pneg %p93
        %p343 = pneg %p90
        %p344 = pneg %p114
        %p345 = pneg %p111
        %p346 = pneg %p135
        %p347 = pneg %p132
        %p348 = pneg %p156
        %p349 = pneg %p153
        %p350 = pneg %p182
        %p351 = pneg %p179
        %s352 = sand.u32 %s169, 1
        %s353 = scalar_lea.sflag [#allocation4], %s352
        %s354 = sand.u32 %s169, 1
        %s355 = smul.addr %s354, 32
        %s356 = scalar_lea.vmem [#allocation8], %s355
        %p357 = pneg %p208
        %p358 = pneg %p205
        %s359 = sand.u32 %s30, 1
        %s360 = scalar_lea.sflag [#allocation10], %s359
        %s361 = sand.u32 %s195, 1
        %s362 = smul.addr %s361, 32
        %s363 = scalar_lea.vmem [#allocation9], %s362
        %p364 = pneg %p234
        %p365 = pneg %p231
        %s366 = sand.u32 %s30, 1
        %s367 = scalar_lea.sflag [#allocation10], %s366
        %s368 = sand.u32 %s221, 1
        %s369 = smul.addr %s368, 32
        %s370 = scalar_lea.vmem [#allocation11], %s369
        %v372 = vld [vmem:[%s320] sm:$0xff]
        %v373 = vld [vmem:[%s320 + $0x8] sm:$0xff]
        %v374 = vld [vmem:[%s320 + $0x10] sm:$0xff]
        %v375 = vld [vmem:[%s320 + $0x18] sm:$0xff]
        %v376 = vld [vmem:[%s320 + $0x20] sm:$0xff]
        %v377 = vld [vmem:[%s320 + $0x28] sm:$0xff]
        %v378 = vld [vmem:[%s320 + $0x30] sm:$0xff]
        %v379 = vld [vmem:[%s320 + $0x38] sm:$0xff]
        %vm380 = vcmask 523264
        %v381 = vsel %vm380, %v372, 0.0
        %v382 = vsel %vm380, %v373, 0.0
        %v383 = vadd.f32 %v381, %v382
        %v384 = vsel %vm380, %v374, 0.0
        %v385 = vadd.f32 %v383, %v384
        %v386 = vsel %vm380, %v375, 0.0
        %v387 = vadd.f32 %v385, %v386
        %v388 = vsel %vm380, %v376, 0.0
        %v389 = vadd.f32 %v387, %v388
        %v390 = vsel %vm380, %v377, 0.0
        %v391 = vadd.f32 %v389, %v390
        %v392 = vsel %vm380, %v378, 0.0
        %v393 = vadd.f32 %v391, %v392
        %v394 = vsel %vm380, %v379, 0.0
        %v395 = vadd.f32 %v393, %v394
        %v396 = vrot.slane %v395, 4
        %v397 = vadd.f32 %v395, %v396
        %v398 = vrot.slane %v397, 2
        %v399 = vadd.f32 %v397, %v398
        %v400 = vrot.slane %v399, 1
        %v401 = vadd.f32 %v399, %v400
        %v402 = vmul.f32 %v401, 0.015625
        %v403 = vmul.f32 %v372, %v372
        %v404 = vmul.f32 %v373, %v373
        %v405 = vmul.f32 %v374, %v374
        %v406 = vmul.f32 %v375, %v375
        %v407 = vmul.f32 %v376, %v376
        %v408 = vmul.f32 %v377, %v377
        %v409 = vmul.f32 %v378, %v378
        %v410 = vmul.f32 %v379, %v379
        %v411 = vsel %vm380, %v403, 0.0
        %v412 = vsel %vm380, %v404, 0.0
        %v413 = vadd.f32 %v411, %v412
        %v414 = vsel %vm380, %v405, 0.0
        %v415 = vadd.f32 %v413, %v414
        %v416 = vsel %vm380, %v406, 0.0
        %v417 = vadd.f32 %v415, %v416
        %v418 = vsel %vm380, %v407, 0.0
        %v419 = vadd.f32 %v417, %v418
        %v420 = vsel %vm380, %v408, 0.0
        %v421 = vadd.f32 %v419, %v420
        %v422 = vsel %vm380, %v409, 0.0
        %v423 = vadd.f32 %v421, %v422
        %v424 = vsel %vm380, %v410, 0.0
        %v425 = vadd.f32 %v423, %v424
        %v426 = vrot.slane %v425, 4
        %v427 = vadd.f32 %v425, %v426
        %v428 = vrot.slane %v427, 2
        %v429 = vadd.f32 %v427, %v428
        %v430 = vrot.slane %v429, 1
        %v431 = vadd.f32 %v429, %v430
        %v432 = vmul.f32 %v431, 0.015625
        %v433 = vld [vmem:[#allocation5] sm:$0xff]
        %v434 = vld [vmem:[#allocation5 + $0x8] sm:$0xff]
        %v435 = vld [vmem:[#allocation5 + $0x10] sm:$0xff]
        %v436 = vld [vmem:[#allocation5 + $0x18] sm:$0xff]
        %v437 = vld [vmem:[#allocation5 + $0x20] sm:$0xff]
        %v438 = vld [vmem:[#allocation5 + $0x28] sm:$0xff]
        %v439 = vld [vmem:[#allocation5 + $0x30] sm:$0xff]
        %v440 = vld [vmem:[#allocation5 + $0x38] sm:$0xff]
        %v442 = vsel %vm380, %v402, 0
        %444 = vmatprep.subr.mxu0 0.0
        %445 = vmatpush1.msra.mxu0 %v433
        %446 = vmatprep.subr.mxu0 0.0
        %447 = vmatpush1.msra.mxu0 %v434
        %448 = vmatprep.subr.mxu0 0.0
        %449 = vmatpush1.msra.mxu0 %v435
        %450 = vmatprep.subr.mxu0 0.0
        %451 = vmatpush1.msra.mxu0 %v436
        %452 = vmatprep.subr.mxu0 0.0
        %453 = vmatpush1.msra.mxu0 %v437
        %454 = vmatprep.subr.mxu0 0.0
        %455 = vmatpush1.msra.mxu0 %v438
        %456 = vmatprep.subr.mxu0 0.0
        %457 = vmatpush1.msra.mxu0 %v439
        %458 = vmatprep.subr.mxu0 0.0
        %459 = vmatpush1.msra.mxu0 %v440
        %460 = vmatprep.subr.mxu0 0.0
        %461 = vmatpush1.msra.mxu0 0.0
        %462 = vmatprep.subr.mxu0 0.0
        %463 = vmatpush1.msra.mxu0 0.0
        %464 = vmatprep.subr.mxu0 0.0
        %465 = vmatpush1.msra.mxu0 0.0
        %466 = vmatprep.subr.mxu0 0.0
        %467 = vmatpush1.msra.mxu0 0.0
        %468 = vmatprep.subr.mxu0 0.0
        %469 = vmatpush1.msra.mxu0 0.0
        %470 = vmatprep.subr.mxu0 0.0
        %471 = vmatpush1.msra.mxu0 0.0
        %472 = vmatprep.subr.mxu0 0.0
        %473 = vmatpush1.msra.mxu0 0.0
        %474 = vmatprep.subr.mxu0 0.0
        %475 = vmatpush1.msra.mxu0 0.0
        %476 = vmatprep.subr.mxu0 0.0
        %477 = vmatpush1.msra.mxu0 0.0
        %478 = vmatprep.subr.mxu0 0.0
        %479 = vmatpush1.msra.mxu0 0.0
        %480 = vmatprep.subr.mxu0 0.0
        %481 = vmatpush1.msra.mxu0 0.0
        %482 = vmatprep.subr.mxu0 0.0
        %483 = vmatpush1.msra.mxu0 0.0
        %484 = vmatprep.subr.mxu0 0.0
        %485 = vmatpush1.msra.mxu0 0.0
        %486 = vmatprep.subr.mxu0 0.0
        %487 = vmatpush1.msra.mxu0 0.0
        %488 = vmatprep.subr.mxu0 0.0
        %489 = vmatpush1.msra.mxu0 0.0
        %490 = vmatprep.subr.mxu0 0.0
        %491 = vmatpush1.msra.mxu0 0.0
        %492 = vmatprep.subr.mxu0 0.0
        %493 = vmatpush1.msra.mxu0 0.0
        %494 = vmatprep.subr.mxu0 0.0
        %495 = vmatpush1.msra.mxu0 0.0
        %496 = vmatprep.subr.mxu0 0.0
        %497 = vmatpush1.msra.mxu0 0.0
        %498 = vmatprep.subr.mxu0 0.0
        %499 = vmatpush1.msra.mxu0 0.0
        %500 = vmatprep.subr.mxu0 0.0
        %501 = vmatpush1.msra.mxu0 0.0
        %502 = vmatprep.subr.mxu0 0.0
        %503 = vmatpush1.msra.mxu0 0.0
        %504 = vmatprep.subr.mxu0 0.0
        %505 = vmatpush1.msra.mxu0 0.0
        %506 = vmatprep.subr.mxu0 0.0
        %507 = vmatpush1.msra.mxu0 0.0
        %508 = vmatprep.mubr.f32.mxu0 0.0
        %509 = vmatmul.mubr.f32.gmra.mrb[0].mxu0 %v442
        %v510 = vpop.f32.mrb[0].mxu0
        %v511 = vadd.f32 0.0, %v510
        %v512 = vpop.f32.mrb[0].mxu0
        %513 = vdwg.mxu0
        %v515 = vsel %vm380, %v432, 0
        %517 = vmatprep.subr.mxu0 0.0
        %518 = vmatpush1.msra.mxu0 %v433
        %519 = vmatprep.subr.mxu0 0.0
        %520 = vmatpush1.msra.mxu0 %v434
        %521 = vmatprep.subr.mxu0 0.0
        %522 = vmatpush1.msra.mxu0 %v435
        %523 = vmatprep.subr.mxu0 0.0
        %524 = vmatpush1.msra.mxu0 %v436
        %525 = vmatprep.subr.mxu0 0.0
        %526 = vmatpush1.msra.mxu0 %v437
        %527 = vmatprep.subr.mxu0 0.0
        %528 = vmatpush1.msra.mxu0 %v438
        %529 = vmatprep.subr.mxu0 0.0
        %530 = vmatpush1.msra.mxu0 %v439
        %531 = vmatprep.subr.mxu0 0.0
        %532 = vmatpush1.msra.mxu0 %v440
        %533 = vmatprep.subr.mxu0 0.0
        %534 = vmatpush1.msra.mxu0 0.0
        %535 = vmatprep.subr.mxu0 0.0
        %536 = vmatpush1.msra.mxu0 0.0
        %537 = vmatprep.subr.mxu0 0.0
        %538 = vmatpush1.msra.mxu0 0.0
        %539 = vmatprep.subr.mxu0 0.0
        %540 = vmatpush1.msra.mxu0 0.0
        %541 = vmatprep.subr.mxu0 0.0
        %542 = vmatpush1.msra.mxu0 0.0
        %543 = vmatprep.subr.mxu0 0.0
        %544 = vmatpush1.msra.mxu0 0.0
        %545 = vmatprep.subr.mxu0 0.0
        %546 = vmatpush1.msra.mxu0 0.0
        %547 = vmatprep.subr.mxu0 0.0
        %548 = vmatpush1.msra.mxu0 0.0
        %549 = vmatprep.subr.mxu0 0.0
        %550 = vmatpush1.msra.mxu0 0.0
        %551 = vmatprep.subr.mxu0 0.0
        %552 = vmatpush1.msra.mxu0 0.0
        %553 = vmatprep.subr.mxu0 0.0
        %554 = vmatpush1.msra.mxu0 0.0
        %555 = vmatprep.subr.mxu0 0.0
        %556 = vmatpush1.msra.mxu0 0.0
        %557 = vmatprep.subr.mxu0 0.0
        %558 = vmatpush1.msra.mxu0 0.0
        %559 = vmatprep.subr.mxu0 0.0
        %560 = vmatpush1.msra.mxu0 0.0
        %561 = vmatprep.subr.mxu0 0.0
        %562 = vmatpush1.msra.mxu0 0.0
        %563 = vmatprep.subr.mxu0 0.0
        %564 = vmatpush1.msra.mxu0 0.0
        %565 = vmatprep.subr.mxu0 0.0
        %566 = vmatpush1.msra.mxu0 0.0
        %567 = vmatprep.subr.mxu0 0.0
        %568 = vmatpush1.msra.mxu0 0.0
        %569 = vmatprep.subr.mxu0 0.0
        %570 = vmatpush1.msra.mxu0 0.0
        %571 = vmatprep.subr.mxu0 0.0
        %572 = vmatpush1.msra.mxu0 0.0
        %573 = vmatprep.subr.mxu0 0.0
        %574 = vmatpush1.msra.mxu0 0.0
        %575 = vmatprep.subr.mxu0 0.0
        %576 = vmatpush1.msra.mxu0 0.0
        %577 = vmatprep.subr.mxu0 0.0
        %578 = vmatpush1.msra.mxu0 0.0
        %579 = vmatprep.subr.mxu0 0.0
        %580 = vmatpush1.msra.mxu0 0.0
        %581 = vmatprep.mubr.f32.mxu0 0.0
        %582 = vmatmul.mubr.f32.gmra.mrb[0].mxu0 %v515
        %v583 = vpop.f32.mrb[0].mxu0
        %v584 = vadd.f32 0.0, %v583
        %v585 = vpop.f32.mrb[0].mxu0
        %586 = vdwg.mxu0
        %v587 = vmul.f32 %v511, %v511
        %v588 = vsub.f32 %v584, %v587
        %v589 = vmax.f32 %v588, 0.0
        %v590 = vadd.f32 %v589, 1e-06
        %v591 = vrsqrt.pop %v590
        %v592 = vld [vmem:[%s2] sm:$0x1]
        %v593 = vmul.f32 %v592, %v591
        %v594 = vld [vmem:[%s3] sm:$0x1]
        %v595 = vmul.f32 %v511, %v593
        %v596 = vsub.f32 %v594, %v595
        %v598 = vlaneseq
        %v599 = vshrl.u32 %v598, 7
        %v600 = vsub.s32 0, %v599
        %v601 = vrot.slane %v593, %v600
        %v603 = vmul.f32 %v372, %v601
        %v604 = vmul.f32 %v373, %v601
        %v605 = vmul.f32 %v374, %v601
        %v606 = vmul.f32 %v375, %v601
        %v607 = vmul.f32 %v376, %v601
        %v608 = vmul.f32 %v377, %v601
        %v609 = vmul.f32 %v378, %v601
        %v610 = vmul.f32 %v379, %v601
        %v612 = vlaneseq
        %v613 = vshrl.u32 %v612, 7
        %v614 = vsub.s32 0, %v613
        %v615 = vrot.slane %v596, %v614
        %v617 = vadd.f32 %v603, %v615
        %v618 = vadd.f32 %v604, %v615
        %v619 = vadd.f32 %v605, %v615
        %v620 = vadd.f32 %v606, %v615
        %v621 = vadd.f32 %v607, %v615
        %v622 = vadd.f32 %v608, %v615
        %v623 = vadd.f32 %v609, %v615
        %v624 = vadd.f32 %v610, %v615
        %v625 = vpack.c.bf16 %v618, %v617
        %v626 = vpack.c.bf16 %v620, %v619
        %v627 = vpack.c.bf16 %v622, %v621
        %v628 = vpack.c.bf16 %v624, %v623
        %v629 = vld [vmem:[#allocation7] sm:$0xff]
        %v630 = vld [vmem:[#allocation7 + $0x8] sm:$0xff]
        %v631 = vld [vmem:[#allocation7 + $0x10] sm:$0xff]
        %v632 = vld [vmem:[#allocation7 + $0x18] sm:$0xff]
        %v633 = vld [vmem:[#allocation7 + $0x20] sm:$0xff]
        %v634 = vld [vmem:[#allocation7 + $0x28] sm:$0xff]
        %v635 = vld [vmem:[#allocation7 + $0x30] sm:$0xff]
        %v636 = vld [vmem:[#allocation7 + $0x38] sm:$0xff]
        %v637 = vld [vmem:[%s5] sm:$0x3]
        %v639 = vlaneseq
        %v640 = vshrl.u32 %v639, 7
        %v641 = vsub.s32 0, %v640
        %v642 = vrot.slane %v637, %v641
        %v643 = vlaneseq
        %v644 = vshrl.u32 %v643, 7
        %v645 = vsub.s32 1, %v644
        %v646 = vrot.slane %v637, %v645
        %v657 = vunpack.c.l.b16 %v629
        %v658 = vunpack.c.h.b16 %v629
        %v659 = vunpack.c.l.b16 %v630
        %v660 = vunpack.c.h.b16 %v630
        %v661 = vunpack.c.l.b16 %v631
        %v662 = vunpack.c.h.b16 %v631
        %v663 = vunpack.c.l.b16 %v632
        %v664 = vunpack.c.h.b16 %v632
        %v665 = vunpack.c.l.b16 %v633
        %v666 = vunpack.c.h.b16 %v633
        %v667 = vunpack.c.l.b16 %v634
        %v668 = vunpack.c.h.b16 %v634
        %v669 = vunpack.c.l.b16 %v635
        %v670 = vunpack.c.h.b16 %v635
        %v671 = vunpack.c.l.b16 %v636
        %v672 = vunpack.c.h.b16 %v636
        %v673 = vpack.c.b16 %v659, %v657
        %v674 = vpack.c.b16 %v660, %v658
        %v675 = vpack.c.b16 %v663, %v661
        %v676 = vpack.c.b16 %v664, %v662
        %v677 = vpack.c.b16 %v667, %v665
        %v678 = vpack.c.b16 %v668, %v666
        %v679 = vpack.c.b16 %v671, %v669
        %v680 = vpack.c.b16 %v672, %v670
        %v690 = vsel %vm380, %v625, 0
        %v693 = vsel %vm380, %v626, 0
        %v696 = vsel %vm380, %v627, 0
        %v699 = vsel %vm380, %v628, 0
        %701 = vmatprep.subr.bf16.mxu0 %v674
        %702 = vmatpush1.bf16.msra.mxu0 %v673
        %703 = vmatprep.subr.bf16.mxu0 %v676
        %704 = vmatpush1.bf16.msra.mxu0 %v675
        %705 = vmatprep.subr.bf16.mxu0 %v678
        %706 = vmatpush1.bf16.msra.mxu0 %v677
        %707 = vmatprep.subr.bf16.mxu0 %v680
        %708 = vmatpush1.bf16.msra.mxu0 %v679
        %709 = vmatprep.subr.bf16.mxu0 0
        %710 = vmatpush1.bf16.msra.mxu0 0
        %711 = vmatprep.subr.bf16.mxu0 0
        %712 = vmatpush1.bf16.msra.mxu0 0
        %713 = vmatprep.subr.bf16.mxu0 0
        %714 = vmatpush1.bf16.msra.mxu0 0
        %715 = vmatprep.subr.bf16.mxu0 0
        %716 = vmatpush1.bf16.msra.mxu0 0
        %717 = vmatprep.subr.bf16.mxu0 0
        %718 = vmatpush1.bf16.msra.mxu0 0
        %719 = vmatprep.subr.bf16.mxu0 0
        %720 = vmatpush1.bf16.msra.mxu0 0
        %721 = vmatprep.subr.bf16.mxu0 0
        %722 = vmatpush1.bf16.msra.mxu0 0
        %723 = vmatprep.subr.bf16.mxu0 0
        %724 = vmatpush1.bf16.msra.mxu0 0
        %725 = vmatprep.subr.bf16.mxu0 0
        %726 = vmatpush1.bf16.msra.mxu0 0
        %727 = vmatprep.subr.bf16.mxu0 0
        %728 = vmatpush1.bf16.msra.mxu0 0
        %729 = vmatprep.subr.bf16.mxu0 0
        %730 = vmatpush1.bf16.msra.mxu0 0
        %731 = vmatprep.subr.bf16.mxu0 0
        %732 = vmatpush1.bf16.msra.mxu0 0
        %733 = vmatprep.mubr.bf16.mxu0 0
        %734 = vmatmul.mubr.bf16.gmra.mrb[0].mxu0 %v690
        %v735 = vpop.f32.mrb[0].mxu0
        %v736 = vadd.f32 %v642, %v735
        %v737 = vpop.f32.mrb[0].mxu0
        %v738 = vadd.f32 %v646, %v737
        %v739 = vpop.f32.mrb[0].mxu0
        %v740 = vadd.f32 %v642, %v739
        %v741 = vpop.f32.mrb[0].mxu0
        %v742 = vadd.f32 %v646, %v741
        %743 = vmatprep.mubr.bf16.mxu0 0
        %744 = vmatmul.mubr.bf16.gmra.mrb[0].mxu0 %v693
        %v745 = vpop.f32.mrb[0].mxu0
        %v746 = vadd.f32 %v642, %v745
        %v747 = vpop.f32.mrb[0].mxu0
        %v748 = vadd.f32 %v646, %v747
        %v749 = vpop.f32.mrb[0].mxu0
        %v750 = vadd.f32 %v642, %v749
        %v751 = vpop.f32.mrb[0].mxu0
        %v752 = vadd.f32 %v646, %v751
        %753 = vmatprep.mubr.bf16.mxu0 0
        %754 = vmatmul.mubr.bf16.gmra.mrb[0].mxu0 %v696
        %v755 = vpop.f32.mrb[0].mxu0
        %v756 = vadd.f32 %v642, %v755
        %v757 = vpop.f32.mrb[0].mxu0
        %v758 = vadd.f32 %v646, %v757
        %v759 = vpop.f32.mrb[0].mxu0
        %v760 = vadd.f32 %v642, %v759
        %v761 = vpop.f32.mrb[0].mxu0
        %v762 = vadd.f32 %v646, %v761
        %763 = vmatprep.mubr.bf16.mxu0 0
        %764 = vmatmul.mubr.bf16.gmra.mrb[0].mxu0 %v699
        %v765 = vpop.f32.mrb[0].mxu0
        %v766 = vadd.f32 %v642, %v765
        %v767 = vpop.f32.mrb[0].mxu0
        %v768 = vadd.f32 %v646, %v767
        %v769 = vpop.f32.mrb[0].mxu0
        %v770 = vadd.f32 %v642, %v769
        %v771 = vpop.f32.mrb[0].mxu0
        %v772 = vadd.f32 %v646, %v771
        %773 = vdwg.mxu0
        %v774 = vpack.c.bf16 %v740, %v736
        %v775 = vpack.c.bf16 %v750, %v746
        %v776 = vpack.c.bf16 %v760, %v756
        %v777 = vpack.c.bf16 %v770, %v766
        %v782 = vunpack.c.l.b16 %v774
        %v783 = vunpack.c.h.b16 %v774
        %v784 = vunpack.c.l.b16 %v775
        %v785 = vunpack.c.h.b16 %v775
        %v786 = vunpack.c.l.b16 %v776
        %v787 = vunpack.c.h.b16 %v776
        %v788 = vunpack.c.l.b16 %v777
        %v789 = vunpack.c.h.b16 %v777
        %v790 = vpack.c.b16 %v782, %v782
        %v791 = vpack.c.b16 %v783, %v783
        %v792 = vpack.c.b16 %v784, %v784
        %v793 = vpack.c.b16 %v785, %v785
        %v794 = vpack.c.b16 %v786, %v786
        %v795 = vpack.c.b16 %v787, %v787
        %v796 = vpack.c.b16 %v788, %v788
        %v797 = vpack.c.b16 %v789, %v789
        %vm806 = vcmask 519168
        %807 = vst.msk [vmem:[%s356] sm:$0xf] %vm806, %v790
        %808 = vst.msk [vmem:[%s356 + $0x4] sm:$0xf] %vm806, %v791
        %809 = vst.msk [vmem:[%s356 + $0x8] sm:$0xf] %vm806, %v792
        %810 = vst.msk [vmem:[%s356 + $0xc] sm:$0xf] %vm806, %v793
        %811 = vst.msk [vmem:[%s356 + $0x10] sm:$0xf] %vm806, %v794
        %812 = vst.msk [vmem:[%s356 + $0x14] sm:$0xf] %vm806, %v795
        %813 = vst.msk [vmem:[%s356 + $0x18] sm:$0xf] %vm806, %v796
        %814 = vst.msk [vmem:[%s356 + $0x1c] sm:$0xf] %vm806, %v797
        %815 = vrot.lane.b32.xlu0 %v790, 64
        %v816 = vpop.permute.xlu0 %815
        %817 = vrot.lane.b32.xlu0 %v791, 64
        %v818 = vpop.permute.xlu0 %817
        %819 = vrot.lane.b32.xlu0 %v792, 64
        %v820 = vpop.permute.xlu0 %819
        %821 = vrot.lane.b32.xlu0 %v793, 64
        %v822 = vpop.permute.xlu0 %821
        %823 = vrot.lane.b32.xlu0 %v794, 64
        %v824 = vpop.permute.xlu0 %823
        %825 = vrot.lane.b32.xlu0 %v795, 64
        %v826 = vpop.permute.xlu0 %825
        %827 = vrot.lane.b32.xlu0 %v796, 64
        %v828 = vpop.permute.xlu0 %827
        %829 = vrot.lane.b32.xlu0 %v797, 64
        %v830 = vpop.permute.xlu0 %829
        %839 = vst.msk [vmem:[%s363] sm:$0xf] %vm806, %v816
        %840 = vst.msk [vmem:[%s363 + $0x4] sm:$0xf] %vm806, %v818
        %841 = vst.msk [vmem:[%s363 + $0x8] sm:$0xf] %vm806, %v820
        %842 = vst.msk [vmem:[%s363 + $0xc] sm:$0xf] %vm806, %v822
        %843 = vst.msk [vmem:[%s363 + $0x10] sm:$0xf] %vm806, %v824
        %844 = vst.msk [vmem:[%s363 + $0x14] sm:$0xf] %vm806, %v826
        %845 = vst.msk [vmem:[%s363 + $0x18] sm:$0xf] %vm806, %v828
        %846 = vst.msk [vmem:[%s363 + $0x1c] sm:$0xf] %vm806, %v830
        %v847 = vpack.c.bf16 %v742, %v738
        %v848 = vpack.c.bf16 %v752, %v748
        %v849 = vpack.c.bf16 %v762, %v758
        %v850 = vpack.c.bf16 %v772, %v768
        %v855 = vunpack.c.l.b16 %v847
        %v856 = vunpack.c.h.b16 %v847
        %v857 = vunpack.c.l.b16 %v848
        %v858 = vunpack.c.h.b16 %v848
        %v859 = vunpack.c.l.b16 %v849
        %v860 = vunpack.c.h.b16 %v849
        %v861 = vunpack.c.l.b16 %v850
        %v862 = vunpack.c.h.b16 %v850
        %v863 = vpack.c.b16 %v855, %v855
        %v864 = vpack.c.b16 %v856, %v856
        %v865 = vpack.c.b16 %v857, %v857
        %v866 = vpack.c.b16 %v858, %v858
        %v867 = vpack.c.b16 %v859, %v859
        %v868 = vpack.c.b16 %v860, %v860
        %v869 = vpack.c.b16 %v861, %v861
        %v870 = vpack.c.b16 %v862, %v862
        %879 = vst.msk [vmem:[%s370] sm:$0xf] %vm806, %v863
        %880 = vst.msk [vmem:[%s370 + $0x4] sm:$0xf] %vm806, %v864
        %881 = vst.msk [vmem:[%s370 + $0x8] sm:$0xf] %vm806, %v865
        %882 = vst.msk [vmem:[%s370 + $0xc] sm:$0xf] %vm806, %v866
        %883 = vst.msk [vmem:[%s370 + $0x10] sm:$0xf] %vm806, %v867
        %884 = vst.msk [vmem:[%s370 + $0x14] sm:$0xf] %vm806, %v868
        %885 = vst.msk [vmem:[%s370 + $0x18] sm:$0xf] %vm806, %v869
        %886 = vst.msk [vmem:[%s370 + $0x1c] sm:$0xf] %vm806, %v870
        %s887 = sand.u32 %s169, 1
        %s888 = scalar_lea.sflag [#allocation4], %s887
        %s889 = sand.u32 %s169, 1
        %s890 = smul.addr %s889, 32
        %s891 = scalar_lea.vmem [#allocation8], %s890
        %s892 = sand.u32 %s30, 1
        %s893 = scalar_lea.sflag [#allocation10], %s892
        %s894 = sand.u32 %s195, 1
        %s895 = smul.addr %s894, 32
        %s896 = scalar_lea.vmem [#allocation9], %s895
        %s897 = sand.u32 %s30, 1
        %s898 = scalar_lea.sflag [#allocation10], %s897
        %s899 = sand.u32 %s221, 1
        %s900 = smul.addr %s899, 32
        %s901 = scalar_lea.vmem [#allocation11], %s900
        // Predicated region
        $region57: #{tpu_custom_call.1} parent=43 // pred_check
          %p902 = pneg %p179
        $region58: #{tpu_custom_call.1} parent=43 // pred_check_branch
          %904 = sbr.rel (%p902) target = $region60
        $region59: #{tpu_custom_call.1} parent=43 // pred_region
          %s906 = ssub.s32 512, 512
          %907 = vsyncadd %s888, %s906
          %s908 = smul.addr %s30, 8
          %s909 = smul.addr %s908, 64
          %s910 = scalar_lea.hbm %s6, %s909
          %s911 = sshll.u32 %s891, 4
          %s912 = int_to_ptr.vmem [resolvable:$true] %s911
          %917 = dma.vmem_to_hbm [thread:$0]  %s912, 512, %s910, %s888, 64, 64, 4
        $region60: #{tpu_custom_call.1} parent=43 // pred_fallthru
          _
        // Predicated region
        $region61: #{tpu_custom_call.1} parent=43 // pred_check
          %p918 = pneg %p205
        $region62: #{tpu_custom_call.1} parent=43 // pred_check_branch
          %920 = sbr.rel (%p918) target = $region64
        $region63: #{tpu_custom_call.1} parent=43 // pred_region
          %s922 = ssub.s32 512, 512
          %923 = vsyncadd %s893, %s922
          %s924 = smul.addr %s30, 8
          %s925 = smul.addr %s924, 64
          %s926 = scalar_lea.hbm %s7, %s925
          %s927 = sshll.u32 %s896, 4
          %s928 = int_to_ptr.vmem [resolvable:$true] %s927
          %933 = dma.vmem_to_hbm [thread:$0]  %s928, 512, %s926, %s893, 64, 64, 4
        $region64: #{tpu_custom_call.1} parent=43 // pred_fallthru
          _
        // Predicated region
        $region65: #{tpu_custom_call.1} parent=43 // pred_check
          %p934 = pneg %p231
        $region66: #{tpu_custom_call.1} parent=43 // pred_check_branch
          %936 = sbr.rel (%p934) target = $region68
        $region67: #{tpu_custom_call.1} parent=43 // pred_region
          %s938 = ssub.s32 512, 512
          %939 = vsyncadd %s898, %s938
          %s940 = smul.addr %s30, 8
          %s941 = smul.addr %s940, 64
          %s942 = scalar_lea.hbm %s8, %s941
          %s943 = sshll.u32 %s901, 4
          %s944 = int_to_ptr.vmem [resolvable:$true] %s943
          %949 = dma.vmem_to_hbm [thread:$0]  %s944, 512, %s942, %s898, 64, 64, 4
        $region68: #{tpu_custom_call.1} parent=43 // pred_fallthru
          _
      $region44: #{tpu_custom_call.1} parent=5 // pred_fallthru
        _
      %p950 = scmp.le.s32.totalorder 2, %s25
      // Predicated region
      $region69: #{tpu_custom_call.1} parent=5 // pred_check
        %p951 = pneg %p950
      $region70: #{tpu_custom_call.1} parent=5 // pred_check_branch
        %953 = sbr.rel (%p951) target = $region72
      $region71: #{tpu_custom_call.1} parent=5 // pred_region
        %s954 = ssub.s32 %s25, 2
        // Predicated region
        $region73: #{tpu_custom_call.1} parent=71 // pred_check
          %p955 = pneg %p185
        $region74: #{tpu_custom_call.1} parent=71 // pred_check_branch
          %957 = sbr.rel (%p955) target = $region76
        $region75: #{tpu_custom_call.1} parent=71 // pred_region
          %s958 = sand.u32 %s170, 1
          %s959 = scalar_lea.sflag [#allocation4], %s958
          %s960 = sand.u32 %s170, 1
          %s961 = smul.addr %s960, 32
          %s962 = scalar_lea.vmem [#allocation8], %s961
          %963 = dma.done %s959, 512
        $region76: #{tpu_custom_call.1} parent=71 // pred_fallthru
          _
        // Predicated region
        $region77: #{tpu_custom_call.1} parent=71 // pred_check
          %p964 = pneg %p211
        $region78: #{tpu_custom_call.1} parent=71 // pred_check_branch
          %966 = sbr.rel (%p964) target = $region80
        $region79: #{tpu_custom_call.1} parent=71 // pred_region
          %s967 = sand.u32 %s31, 1
          %s968 = scalar_lea.sflag [#allocation10], %s967
          %s969 = sand.u32 %s196, 1
          %s970 = smul.addr %s969, 32
          %s971 = scalar_lea.vmem [#allocation9], %s970
          %972 = dma.done %s968, 512
        $region80: #{tpu_custom_call.1} parent=71 // pred_fallthru
          _
        // Predicated region
        $region81: #{tpu_custom_call.1} parent=71 // pred_check
          %p973 = pneg %p237
        $region82: #{tpu_custom_call.1} parent=71 // pred_check_branch
          %975 = sbr.rel (%p973) target = $region84
        $region83: #{tpu_custom_call.1} parent=71 // pred_region
          %s976 = sand.u32 %s31, 1
          %s977 = scalar_lea.sflag [#allocation10], %s976
          %s978 = sand.u32 %s222, 1
          %s979 = smul.addr %s978, 32
          %s980 = scalar_lea.vmem [#allocation11], %s979
          %981 = dma.done %s977, 512
        $region84: #{tpu_custom_call.1} parent=71 // pred_fallthru
          _
      $region72: #{tpu_custom_call.1} parent=5 // pred_fallthru
        _
    $region6: #{tpu_custom_call.1} parent=1 // loop_footer
      %s29 = sadd.s32 1, %s25
    $region7: #{tpu_custom_call.1} parent=1 // loop_footer_branch
      %24 = sbr.rel target = $region3
    $region8: #{tpu_custom_call.1} parent=1 // loop_exit
      _
    %982 = vsyncpa [#allocation3], 1
    %s983 = scalar_lea.sflag [#allocation3], 1
    %984 = vsyncpa %s983, 1
    %985 = vsyncpa [#allocation6], 1
    %986 = vsyncpa [#allocation4], 1
    %s987 = scalar_lea.sflag [#allocation4], 1
    %988 = vsyncpa %s987, 1
    %989 = vsyncpa [#allocation10], 1
    %s990 = scalar_lea.sflag [#allocation10], 1
    %991 = vsyncpa %s990, 1

</llo_original>
